<compile_context>
chip_gen: v5e
topology: v5e:2x2
jax: 0.10.0
libtpu: 0.0.40
codegen_flags: <defaults>
</compile_context>

<pallas_src>
import math

import jax
import jax.numpy as jnp
import numpy as np
from jax.experimental import pallas as pl
from jax.experimental.pallas import tpu as pltpu

EPS = 1e-5  # nn.BatchNorm2d default


# ----------------------------------------------------------------------------
# in-kernel helpers
# ----------------------------------------------------------------------------
def _conv3x3_im2col(x, w_ref):
    """3x3 SAME conv of a halo'd stripe as ONE K=9*C matmul.

    x     : (TH+2, WP+2, C) activation value (already correctly zero-padded).
    w_ref : (9*C, Cout) weight ref, rows ordered ((ky*3+kx)*C + c).
    Returns f32 (TH*WP, Cout).
    """
    thp2, wpp2, c = x.shape
    th, wp = thp2 - 2, wpp2 - 2
    taps = [x[dy:dy + th, dx:dx + wp, :].reshape(th * wp, c)
            for dy in range(3) for dx in range(3)]
    patches = jnp.concatenate(taps, axis=-1)            # (TH*WP, 9*C)
    return jnp.dot(patches, w_ref[...], preferred_element_type=jnp.float32)


def _channel_moments(acc):
    """Single-pass per-channel [sum; sum of squares] of an f32 (rows, C) tile."""
    s1 = jnp.sum(acc, axis=0, keepdims=True)
    s2 = jnp.sum(acc * acc, axis=0, keepdims=True)
    return jnp.concatenate([s1, s2], axis=0)            # (2, C)


# ----------------------------------------------------------------------------
# kernels
# ----------------------------------------------------------------------------
def upsample2x_kernel(x_ref, w_ref, b_ref, o_ref):
    """ConvTranspose2d(kernel=2, stride=2): one (H*W, C1) x (C1, 4*Cup) matmul.

    Output channels are ordered (ky, kx, cout); the depth-to-space rearrangement
    is pure layout plumbing done in the wrapper.
    """
    h, w, c1 = x_ref.shape[1], x_ref.shape[2], x_ref.shape[3]
    c4 = o_ref.shape[3]
    r = jnp.dot(x_ref[0].reshape(h * w, c1), w_ref[...],
                preferred_element_type=jnp.float32)
    r = r + b_ref[...]
    o_ref[0] = r.reshape(h, w, c4).astype(o_ref.dtype)


def conv_pre_bn_kernel(x_ref, w_ref, h_ref, mom_ref):
    """conv1 (im2col) on one (batch, H-stripe) tile + per-tile BN partial sums."""
    th, wp, cout = h_ref.shape[2], h_ref.shape[3], h_ref.shape[4]
    acc = _conv3x3_im2col(x_ref[0, 0], w_ref)           # f32 (TH*WP, Cout)
    h_ref[0, 0] = acc.reshape(th, wp, cout)
    mom_ref[0, 0] = _channel_moments(acc)


def bn_relu_conv_pre_bn_kernel(h_in_ref, scale_ref, shift_ref, w_ref,
                               h_out_ref, mom_ref):
    """BN1 (precomputed scale/shift) + ReLU + conv2 (im2col) + BN2 partial sums.

    The input stripe carries a 1-pixel ring from the wrapper's zero padding of the
    *pre-BN* activations; only that ring is forced back to zero after BN+ReLU so
    conv2 sees the correct SAME zero padding.  Interior halo rows are normalized
    with the same global statistics as in their own stripe, so they match exactly.
    """
    s = pl.program_id(1)
    ns = pl.num_programs(1)
    thp2, wpp2 = h_in_ref.shape[2], h_in_ref.shape[3]
    th, wp, cout = h_out_ref.shape[2], h_out_ref.shape[3], h_out_ref.shape[4]

    a = jnp.maximum(h_in_ref[0, 0] * scale_ref[...] + shift_ref[...], 0.0)
    row = jax.lax.broadcasted_iota(jnp.int32, a.shape, 0)
    col = jax.lax.broadcasted_iota(jnp.int32, a.shape, 1)
    ring = ((col == 0) | (col == wpp2 - 1)
            | ((row == 0) & (s == 0))
            | ((row == thp2 - 1) & (s == ns - 1)))
    a = jnp.where(ring, 0.0, a).astype(w_ref.dtype)

    acc = _conv3x3_im2col(a, w_ref)
    h_out_ref[0, 0] = acc.reshape(th, wp, cout)
    mom_ref[0, 0] = _channel_moments(acc)


def bn_relu_kernel(h_ref, scale_ref, shift_ref, o_ref):
    """Final BN2 + ReLU (elementwise)."""
    y = h_ref[0, 0] * scale_ref[...] + shift_ref[...]
    o_ref[0, 0] = jnp.maximum(y, 0.0).astype(o_ref.dtype)


# ----------------------------------------------------------------------------
# wrapper helpers
# ----------------------------------------------------------------------------
def _bytes(shape, dtype):
    return int(np.prod(shape)) * jnp.dtype(dtype).itemsize


def _compiler_params(grid_sem, *block_bytes):
    # BlockSpec pipelining double-buffers every gridded block; add headroom and
    # clamp below the smallest physical VMEM (v7x: 64 MiB).
    est = 2 * int(sum(block_bytes)) + (4 << 20)
    return pltpu.CompilerParams(
        dimension_semantics=grid_sem,
        vmem_limit_bytes=int(min(max(est, 16 << 20), 48 << 20)),
    )


def _halo_stripes(xpad, th):
    """(N, HP+2, WP+2, C) zero-padded -> (N, nS, th+2, WP+2, C) overlapping stripes."""
    hp = xpad.shape[1] - 2
    ns = hp // th
    return jnp.stack([xpad[:, s * th:s * th + th + 2] for s in range(ns)], axis=1)


def _bn_affine(moments, gamma, beta, count):
    """Finalize batch-norm: scale/shift from per-tile [sum, sumsq] partials."""
    s = jnp.sum(moments, axis=(0, 1))                   # (2, C) f32
    mean = s[0] / count
    var = jnp.maximum(s[1] / count - mean * mean, 0.0)  # E[x^2] - mean^2
    scale = gamma.astype(jnp.float32) * jax.lax.rsqrt(var + EPS)
    shift = beta.astype(jnp.float32) - mean * scale
    return scale.reshape(1, -1), shift.reshape(1, -1)


# ----------------------------------------------------------------------------
# Up.forward
# ----------------------------------------------------------------------------
def up_forward(x1, skip, params, *, compute_dtype=jnp.bfloat16, stripe_rows=8):
    """Pallas forward for Up: up-conv(x1) -> cat([skip, up], C) -> DoubleConv.

    x1   : (N, C1, H, W)  float32 (PyTorch layout)
    skip : (N, Cs, 2H, 2W) float32
    Returns (N, Cout, 2H, 2W) float32.
    Conv biases b1/b2 are accepted but unused: training-mode batch BN cancels them.
    """
    wt, bt, w1, _b1, g1, be1, w2, _b2, g2, be2 = params
    n, c1, h, w = x1.shape
    cup = wt.shape[1]
    cs = skip.shape[1]
    cin1 = cs + cup
    cout = w1.shape[0]
    hp, wp = 2 * h, 2 * w
    cdt = compute_dtype
    f32 = jnp.float32

    # ---- kernel A: ConvTranspose2d(kernel=2, stride=2) --------------------
    x1n = jnp.transpose(x1, (0, 2, 3, 1)).astype(cdt)                    # NHWC
    wtm = jnp.transpose(wt, (0, 2, 3, 1)).reshape(c1, 4 * cup).astype(cdt)
    btm = jnp.tile(bt.astype(f32), 4).reshape(1, 4 * cup)
    blk_x1 = (1, h, w, c1)
    blk_up = (1, h, w, 4 * cup)
    up4 = pl.pallas_call(
        upsample2x_kernel,
        grid=(n,),
        in_specs=[pl.BlockSpec(blk_x1, lambda i: (i, 0, 0, 0)),
                  pl.BlockSpec(wtm.shape, lambda i: (0, 0)),
                  pl.BlockSpec(btm.shape, lambda i: (0, 0))],
        out_specs=pl.BlockSpec(blk_up, lambda i: (i, 0, 0, 0)),
        out_shape=jax.ShapeDtypeStruct((n, h, w, 4 * cup), cdt),
        compiler_params=_compiler_params(
            ("parallel",),
            _bytes(blk_x1, cdt), _bytes(wtm.shape, cdt),
            _bytes(btm.shape, f32), _bytes(blk_up, cdt)),
    )(x1n, wtm, btm)

    # depth-to-space + channel concat + SAME zero padding: layout plumbing only.
    up = up4.reshape(n, h, w, 2, 2, cup).transpose(0, 1, 3, 2, 4, 5)
    up = up.reshape(n, hp, wp, cup)
    xcat = jnp.concatenate(
        [jnp.transpose(skip, (0, 2, 3, 1)).astype(cdt), up], axis=-1)    # (N,HP,WP,Cin1)

    th = stripe_rows if hp % stripe_rows == 0 else math.gcd(hp, stripe_rows)
    ns = hp // th
    count = n * hp * wp

    w1m = jnp.transpose(w1, (2, 3, 1, 0)).reshape(9 * cin1, cout).astype(cdt)
    w2m = jnp.transpose(w2, (2, 3, 1, 0)).reshape(9 * cout, cout).astype(cdt)

    blk_h = (1, 1, th, wp, cout)
    blk_m = (1, 1, 2, cout)

    # ---- kernel B: conv1 (single im2col matmul) + BN1 partial sums --------
    xstr = _halo_stripes(jnp.pad(xcat, ((0, 0), (1, 1), (1, 1), (0, 0))), th)
    blk_in1 = (1, 1, th + 2, wp + 2, cin1)
    h1, m1 = pl.pallas_call(
        conv_pre_bn_kernel,
        grid=(n, ns),
        in_specs=[pl.BlockSpec(blk_in1, lambda i, s: (i, s, 0, 0, 0)),
                  pl.BlockSpec(w1m.shape, lambda i, s: (0, 0))],
        out_specs=[pl.BlockSpec(blk_h, lambda i, s: (i, s, 0, 0, 0)),
                   pl.BlockSpec(blk_m, lambda i, s: (i, s, 0, 0))],
        out_shape=[jax.ShapeDtypeStruct((n, ns, th, wp, cout), f32),
                   jax.ShapeDtypeStruct((n, ns, 2, cout), f32)],
        compiler_params=_compiler_params(
            ("parallel", "parallel"),
            _bytes(blk_in1, cdt), _bytes(w1m.shape, cdt),
            _bytes(blk_h, f32), _bytes(blk_m, f32)),
    )(xstr, w1m)
    scale1, shift1 = _bn_affine(m1, g1, be1, count)

    # ---- kernel C: BN1 + ReLU + conv2 + BN2 partial sums -------------------
    h1pad = jnp.pad(h1.reshape(n, hp, wp, cout), ((0, 0), (1, 1), (1, 1), (0, 0)))
    h1str = _halo_stripes(h1pad, th)
    blk_in2 = (1, 1, th + 2, wp + 2, cout)
    h2, m2 = pl.pallas_call(
        bn_relu_conv_pre_bn_kernel,
        grid=(n, ns),
        in_specs=[pl.BlockSpec(blk_in2, lambda i, s: (i, s, 0, 0, 0)),
                  pl.BlockSpec((1, cout), lambda i, s: (0, 0)),
                  pl.BlockSpec((1, cout), lambda i, s: (0, 0)),
                  pl.BlockSpec(w2m.shape, lambda i, s: (0, 0))],
        out_specs=[pl.BlockSpec(blk_h, lambda i, s: (i, s, 0, 0, 0)),
                   pl.BlockSpec(blk_m, lambda i, s: (i, s, 0, 0))],
        out_shape=[jax.ShapeDtypeStruct((n, ns, th, wp, cout), f32),
                   jax.ShapeDtypeStruct((n, ns, 2, cout), f32)],
        compiler_params=_compiler_params(
            ("parallel", "parallel"),
            _bytes(blk_in2, f32), _bytes(w2m.shape, cdt),
            _bytes(blk_h, f32), _bytes(blk_m, f32)),
    )(h1str, scale1, shift1, w2m)
    scale2, shift2 = _bn_affine(m2, g2, be2, count)

    # ---- kernel D: BN2 + ReLU ----------------------------------------------
    out = pl.pallas_call(
        bn_relu_kernel,
        grid=(n, ns),
        in_specs=[pl.BlockSpec(blk_h, lambda i, s: (i, s, 0, 0, 0)),
                  pl.BlockSpec((1, cout), lambda i, s: (0, 0)),
                  pl.BlockSpec((1, cout), lambda i, s: (0, 0))],
        out_specs=pl.BlockSpec(blk_h, lambda i, s: (i, s, 0, 0, 0)),
        out_shape=jax.ShapeDtypeStruct((n, ns, th, wp, cout), f32),
        compiler_params=_compiler_params(
            ("parallel", "parallel"), _bytes(blk_h, f32), _bytes(blk_h, f32)),
    )(h2, scale2, shift2)

    out = out.reshape(n, hp, wp, cout)
    return jnp.transpose(out, (0, 3, 1, 2))


# ----------------------------------------------------------------------------
# plain-JAX reference (PyTorch Up.forward semantics, training-mode BatchNorm).
# `compute_dtype` only quantizes the matmul operands (f32 accumulation) so the
# bf16 kernel path can be checked against the same rounding points.
# ----------------------------------------------------------------------------
def up_reference(x1, skip, params, *, compute_dtype=jnp.float32):
    wt, bt, w1, b1, g1, be1, w2, b2, g2, be2 = params
    f32 = jnp.float32
    hi = jax.lax.Precision.HIGHEST
    q = lambda t: t.astype(compute_dtype).astype(f32)

    # ConvTranspose2d(kernel=2, stride=2): out[2i+ki, 2j+kj] = sum_c x[i,j,c] w[c,o,ki,kj]
    y = jnp.einsum('nchw,cokl->nohkwl', q(x1), q(wt), precision=hi)
    n, co, h, _, w, _ = y.shape
    y = y.reshape(n, co, 2 * h, 2 * w) + bt[None, :, None, None]
    x = jnp.concatenate([skip, y], axis=1)

    def conv_bn_relu(x, wgt, b, g, be):
        y = jax.lax.conv_general_dilated(
            q(x), q(wgt), window_strides=(1, 1), padding=((1, 1), (1, 1)),
            dimension_numbers=("NCHW", "OIHW", "NCHW"), precision=hi)
        y = y + b[None, :, None, None]
        mean = jnp.mean(y, axis=(0, 2, 3), keepdims=True)
        var = jnp.mean((y - mean) ** 2, axis=(0, 2, 3), keepdims=True)
        y = (y - mean) * jax.lax.rsqrt(var + EPS) * g[None, :, None, None] \
            + be[None, :, None, None]
        return jnp.maximum(y, 0.0)

    x = conv_bn_relu(x, w1, b1, g1, be1)
    return conv_bn_relu(x, w2, b2, g2, be2)


# ----------------------------------------------------------------------------
if __name__ == "__main__":
    # Up(in_channels=8, out_channels=8, skip=2):
    #   x1: (2, 8, 16, 16) -> upsampled to 32x32, concat with skip (2, 8, 32, 32)
    #   -> DoubleConv(16 -> 8) -> output (2, 8, 32, 32)
    N, C1, COUT, H, W = 2, 8, 8, 16, 16
    key = jax.random.PRNGKey(0)
    k = jax.random.split(key, 12)

    x1 = jax.random.normal(k[0], (N, C1, H, W), jnp.float32)
    skip = jax.random.normal(k[1], (N, COUT, 2 * H, 2 * W), jnp.float32)

    wt = 0.1 * jax.random.normal(k[2], (C1, COUT, 2, 2), jnp.float32)      # ConvTranspose2d
    bt = 0.1 * jax.random.normal(k[3], (COUT,), jnp.float32)
    w1 = 0.1 * jax.random.normal(k[4], (COUT, 2 * COUT, 3, 3), jnp.float32)
    b1 = 0.1 * jax.random.normal(k[5], (COUT,), jnp.float32)
    w2 = 0.1 * jax.random.normal(k[6], (COUT, COUT, 3, 3), jnp.float32)
    b2 = 0.1 * jax.random.normal(k[7], (COUT,), jnp.float32)
    g1 = 1.0 + 0.1 * jax.random.normal(k[8], (COUT,), jnp.float32)
    be1 = 0.1 * jax.random.normal(k[9], (COUT,), jnp.float32)
    g2 = 1.0 + 0.1 * jax.random.normal(k[10], (COUT,), jnp.float32)
    be2 = 0.1 * jax.random.normal(k[11], (COUT,), jnp.float32)

    params = (wt, bt, w1, b1, g1, be1, w2, b2, g2, be2)

    # optimized bf16-operand path (default)
    out_bf16 = jax.block_until_ready(
        up_forward(x1, skip, params, compute_dtype=jnp.bfloat16))
    ref_bf16 = jax.block_until_ready(
        up_reference(x1, skip, params, compute_dtype=jnp.bfloat16))
    np.testing.assert_allclose(np.asarray(out_bf16), np.asarray(ref_bf16),
                               rtol=1e-2, atol=1e-2)

    # f32 path against the exact PyTorch-semantics reference
    out_f32 = jax.block_until_ready(
        up_forward(x1, skip, params, compute_dtype=jnp.float32))
    ref_f32 = jax.block_until_ready(
        up_reference(x1, skip, params, compute_dtype=jnp.float32))
    np.testing.assert_allclose(np.asarray(out_f32), np.asarray(ref_f32),
                               rtol=2e-3, atol=2e-3)

    print("KERNEL_OK")
</pallas_src>

<mosaic_0001>
module attributes {stable_mosaic.version = 11 : i64} {
  func.func @upsample2x_kernel(%arg0: i32, %arg1: memref<1x16x16x8xbf16, #tpu.memory_space<vmem>>, %arg2: memref<8x32xbf16, #tpu.memory_space<vmem>>, %arg3: memref<1x32xf32, #tpu.memory_space<vmem>>, %arg4: memref<1x16x16x32xbf16, #tpu.memory_space<vmem>>) attributes {dimension_semantics = [#tpu.dimension_semantics<parallel>], iteration_bounds = array<i64: 2>, scalar_prefetch = 0 : i64, scratch_operands = 0 : i64, tpu.core_type = #tpu.core_type<tc>, window_params = [{transform_indices = @transform_0, window_bounds = array<i64: 1, 16, 16, 8>}, {pipeline_mode = #tpu.pipeline_mode<synchronous>, transform_indices = @transform_1, window_bounds = array<i64: 8, 32>}, {pipeline_mode = #tpu.pipeline_mode<synchronous>, transform_indices = @transform_2, window_bounds = array<i64: 1, 32>}, {transform_indices = @transform_3, window_bounds = array<i64: 1, 16, 16, 32>}]} {
    %c0 = arith.constant 0 : index
    %c0_0 = arith.constant 0 : index
    %c0_1 = arith.constant 0 : index
    %c0_2 = arith.constant 0 : index
    %0 = vector.load %arg1[%c0, %c0_0, %c0_1, %c0_2] : memref<1x16x16x8xbf16, #tpu.memory_space<vmem>>, vector<1x16x16x8xbf16>
    %1 = vector.shape_cast %0 : vector<1x16x16x8xbf16> to vector<16x16x8xbf16>
    %2 = vector.shape_cast %1 : vector<16x16x8xbf16> to vector<256x8xbf16>
    %c0_3 = arith.constant 0 : index
    %c0_4 = arith.constant 0 : index
    %3 = vector.load %arg2[%c0_3, %c0_4] : memref<8x32xbf16, #tpu.memory_space<vmem>>, vector<8x32xbf16>
    %cst = arith.constant dense<0.000000e+00> : vector<256x32xf32>
    %4 = tpu.matmul %2, %3, %cst {dimension_numbers = #tpu.dot_dimension_numbers<[1], [0], [0], [1], [0, 0, 1, 1], [], []>} : vector<256x8xbf16>, vector<8x32xbf16>, vector<256x32xf32> -> vector<256x32xf32>
    %c0_5 = arith.constant 0 : index
    %c0_6 = arith.constant 0 : index
    %5 = vector.load %arg3[%c0_5, %c0_6] : memref<1x32xf32, #tpu.memory_space<vmem>>, vector<1x32xf32>
    %6 = vector.broadcast %5 : vector<1x32xf32> to vector<256x32xf32>
    %7 = arith.addf %4, %6 : vector<256x32xf32>
    %8 = vector.shape_cast %7 : vector<256x32xf32> to vector<16x16x32xf32>
    %9 = arith.truncf %8 : vector<16x16x32xf32> to vector<16x16x32xbf16>
    %c0_7 = arith.constant 0 : index
    %c0_8 = arith.constant 0 : index
    %c0_9 = arith.constant 0 : index
    %c0_10 = arith.constant 0 : index
    %10 = vector.load %arg4[%c0_7, %c0_8, %c0_9, %c0_10] : memref<1x16x16x32xbf16, #tpu.memory_space<vmem>>, vector<1x16x16x32xbf16>
    %11 = vector.shape_cast %10 : vector<1x16x16x32xbf16> to vector<16x16x32xbf16>
    %12 = vector.shape_cast %9 : vector<16x16x32xbf16> to vector<1x16x16x32xbf16>
    tpu.vector_store %arg4[%c0_7, %c0_8, %c0_9, %c0_10], %12 {strides = array<i32>} : memref<1x16x16x32xbf16, #tpu.memory_space<vmem>>, vector<1x16x16x32xbf16>,
    return
  }
  func.func @transform_0(%arg0: i32) -> (i32, i32, i32, i32) {
    %c0_i32 = arith.constant 0 : i32
    %c0_i32_0 = arith.constant 0 : i32
    %c0_i32_1 = arith.constant 0 : i32
    %c0_i32_2 = arith.constant 0 : i32
    return %arg0, %c0_i32, %c0_i32_0, %c0_i32_1 : i32, i32, i32, i32
  }
  func.func @transform_1(%arg0: i32) -> (i32, i32) {
    %c0_i32 = arith.constant 0 : i32
    %c0_i32_0 = arith.constant 0 : i32
    %c0_i32_1 = arith.constant 0 : i32
    return %c0_i32, %c0_i32_0 : i32, i32
  }
  func.func @transform_2(%arg0: i32) -> (i32, i32) {
    %c0_i32 = arith.constant 0 : i32
    %c0_i32_0 = arith.constant 0 : i32
    %c0_i32_1 = arith.constant 0 : i32
    return %c0_i32, %c0_i32_0 : i32, i32
  }
  func.func @transform_3(%arg0: i32) -> (i32, i32, i32, i32) {
    %c0_i32 = arith.constant 0 : i32
    %c0_i32_0 = arith.constant 0 : i32
    %c0_i32_1 = arith.constant 0 : i32
    %c0_i32_2 = arith.constant 0 : i32
    return %arg0, %c0_i32, %c0_i32_0, %c0_i32_1 : i32, i32, i32, i32
  }
}

</mosaic_0001>

<llo_original>
// kernel: tpu_custom_call.1
$region0: #{tpu_custom_call.1}
  #allocation0 [shape = 'u32[]', space=smem, size = 0x4, offset = 0x4, fixed_abs, tag = 'smem constant byte address 0x4 - core index']
  #allocation1 [shape = 'u32[72,128]{1,0:T(1,128)}', space=vmem, size = 0x9000, scoped, tag = 'internal scratch']
  %s0 = inlined_call_operand.vmem [shape: bf16[2,16,16,8], index: 0, kind: input, shape index: {}]
  %s1 = inlined_call_operand.vmem [shape: bf16[8,32], index: 1, kind: input, shape index: {}]
  %s2 = inlined_call_operand.vmem [shape: f32[1,32], index: 2, kind: input, shape index: {}]
  %s3 = inlined_call_operand.hbm [shape: bf16[2,16,16,32], index: 3, kind: output, shape index: {}]
  %s4 = sld [smem:[#allocation0]]
  $region45: #{tpu_custom_call.1} parent=0
    _
  %s6 = ssub.s32 1, %s4
  %s7 = scalar_select 0, %s6, %s4
  $region1: #{tpu_custom_call.1} parent=0
    #allocation2 [shape = 'u8[131072]{0}', space=vmem, size = 0x20000, scoped, tag = 'output window, operand 0']
    #allocation3 [shape = 's32[2]{0}', space=sflag, size = 0x8, scoped, tag = 'scoped memory for tpu_custom_call.1']
    %8 = vsyncpa [#allocation3], 0
    %s9 = scalar_lea.sflag [#allocation3], 1
    %10 = vsyncpa %s9, 0
    loop: start=0, step=1, limit=4
    $region2: #{tpu_custom_call.1} parent=1 // loop_pre_header
      _
    $region3: #{tpu_custom_call.1} parent=1 // loop_header
      %s12 = sphi 0, %s16
      %p13 = scmp.ge.s32.totalorder %s12, 4
      %s22 = sphi 0, %s24
      %s25 = sphi 0, %s22
      %s26 = sphi 0, %s25
      %s42 = sphi 0, %s26
      %s46 = sphi 0, %s46
      %s48 = sphi 0, %s46
      %s49 = sphi 0, %s48
      %s63 = sphi 0, %s49
      %s67 = sphi 0, %s67
      %s69 = sphi 0, %s67
      %s70 = sphi 0, %s69
      %s84 = sphi 0, %s70
      %s90 = sphi 0, %s92
      %s93 = sphi 0, %s90
      %s94 = sphi 0, %s93
      %s110 = sphi 0, %s94
    $region4: #{tpu_custom_call.1} parent=1 // loop_header_branch
      %15 = sbr.rel (%p13) target = $region8
    $region5: #{tpu_custom_call.1} parent=1 // loop_body
      %s17 = ssub.s32 %s12, 1
      %s18 = ssub.s32 %s12, 2
      %s19 = sadd.s32 %s12, 1
      %s20 = ssub.s32 %s12, %s19
      %p21 = scmp.eq.s32.totalorder %s20, 0
      %s23 = sadd.s32 %s22, 1
      %s24 = scalar_select %p21, %s22, %s23
      %p27 = pneg %p21
      %p28 = scmp.eq.s32.totalorder %s12, 1
      %p29 = por %p27, %p28
      %p30 = scmp.ne.s32.totalorder %s22, %s25
      %p31 = scmp.eq.s32.totalorder %s12, 0
      %p32 = por %p30, %p31
      %p33 = scmp.ne.s32.totalorder %s22, %s25
      %p34 = scmp.eq.s32.totalorder %s17, 1
      %p35 = por %p33, %p34
      %p36 = scmp.ne.s32.totalorder %s25, %s26
      %p37 = scmp.eq.s32.totalorder %s17, 0
      %p38 = por %p36, %p37
      %p39 = scmp.ne.s32.totalorder %s25, %s26
      %p40 = scmp.eq.s32.totalorder %s18, 1
      %p41 = por %p39, %p40
      %p43 = scmp.ne.s32.totalorder %s26, %s42
      %p44 = scmp.eq.s32.totalorder %s18, 0
      %p45 = por %p43, %p44
      %s47 = sadd.s32 %s46, 1
      %p50 = scmp.eq.s32.totalorder %s12, 1
      %p51 = scmp.ne.s32.totalorder %s46, %s48
      %p52 = scmp.eq.s32.totalorder %s12, 0
      %p53 = por %p51, %p52
      %p54 = scmp.ne.s32.totalorder %s46, %s48
      %p55 = scmp.eq.s32.totalorder %s17, 1
      %p56 = por %p54, %p55
      %p57 = scmp.ne.s32.totalorder %s48, %s49
      %p58 = scmp.eq.s32.totalorder %s17, 0
      %p59 = por %p57, %p58
      %p60 = scmp.ne.s32.totalorder %s48, %s49
      %p61 = scmp.eq.s32.totalorder %s18, 1
      %p62 = por %p60, %p61
      %p64 = scmp.ne.s32.totalorder %s49, %s63
      %p65 = scmp.eq.s32.totalorder %s18, 0
      %p66 = por %p64, %p65
      %s68 = sadd.s32 %s67, 1
      %p71 = scmp.eq.s32.totalorder %s12, 1
      %p72 = scmp.ne.s32.totalorder %s67, %s69
      %p73 = scmp.eq.s32.totalorder %s12, 0
      %p74 = por %p72, %p73
      %p75 = scmp.ne.s32.totalorder %s67, %s69
      %p76 = scmp.eq.s32.totalorder %s17, 1
      %p77 = por %p75, %p76
      %p78 = scmp.ne.s32.totalorder %s69, %s70
      %p79 = scmp.eq.s32.totalorder %s17, 0
      %p80 = por %p78, %p79
      %p81 = scmp.ne.s32.totalorder %s69, %s70
      %p82 = scmp.eq.s32.totalorder %s18, 1
      %p83 = por %p81, %p82
      %p85 = scmp.ne.s32.totalorder %s70, %s84
      %p86 = scmp.eq.s32.totalorder %s18, 0
      %p87 = por %p85, %p86
      %s88 = ssub.s32 %s12, %s19
      %p89 = scmp.eq.s32.totalorder %s88, 0
      %s91 = sadd.s32 %s90, 1
      %s92 = scalar_select %p89, %s90, %s91
      %p95 = pneg %p89
      %p96 = scmp.eq.s32.totalorder %s12, 1
      %p97 = por %p95, %p96
      %p98 = scmp.ne.s32.totalorder %s90, %s93
      %p99 = scmp.eq.s32.totalorder %s12, 0
      %p100 = por %p98, %p99
      %p101 = scmp.ne.s32.totalorder %s90, %s93
      %p102 = scmp.eq.s32.totalorder %s17, 1
      %p103 = por %p101, %p102
      %p104 = scmp.ne.s32.totalorder %s93, %s94
      %p105 = scmp.eq.s32.totalorder %s17, 0
      %p106 = por %p104, %p105
      %p107 = scmp.ne.s32.totalorder %s93, %s94
      %p108 = scmp.eq.s32.totalorder %s18, 1
      %p109 = por %p107, %p108
      %p111 = scmp.ne.s32.totalorder %s94, %s110
      %p112 = scmp.eq.s32.totalorder %s18, 0
      %p113 = por %p111, %p112
      %p114 = scmp.le.s32.totalorder 1, %s12
      %p115 = scmp.lt.s32.totalorder %s12, 3
      %p116 = pnand %p114, %p115
      %p117 = pneg %p116
      // Predicated region
      $region9: #{tpu_custom_call.1} parent=5 // pred_check
        _
      $region10: #{tpu_custom_call.1} parent=5 // pred_check_branch
        %119 = sbr.rel (%p116) target = $region12
      $region11: #{tpu_custom_call.1} parent=5 // pred_region
        %s120 = ssub.s32 %s12, 1
        // Predicated region
        $region13: #{tpu_custom_call.1} parent=11 // pred_check
          %p121 = pneg %p59
        $region14: #{tpu_custom_call.1} parent=11 // pred_check_branch
          %123 = sbr.rel (%p121) target = $region16
        $region15: #{tpu_custom_call.1} parent=11 // pred_region
          _
        $region16: #{tpu_custom_call.1} parent=11 // pred_fallthru
          _
        // Predicated region
        $region17: #{tpu_custom_call.1} parent=11 // pred_check
          %p124 = pneg %p80
        $region18: #{tpu_custom_call.1} parent=11 // pred_check_branch
          %126 = sbr.rel (%p124) target = $region20
        $region19: #{tpu_custom_call.1} parent=11 // pred_region
          _
        $region20: #{tpu_custom_call.1} parent=11 // pred_fallthru
          _
      $region12: #{tpu_custom_call.1} parent=5 // pred_fallthru
        _
      %p127 = scmp.lt.s32.totalorder %s12, 2
      // Predicated region
      $region21: #{tpu_custom_call.1} parent=5 // pred_check
        %p128 = pneg %p127
      $region22: #{tpu_custom_call.1} parent=5 // pred_check_branch
        %130 = sbr.rel (%p128) target = $region24
      $region23: #{tpu_custom_call.1} parent=5 // pred_region
        // Predicated region
        $region25: #{tpu_custom_call.1} parent=23 // pred_check
          %p131 = pneg %p32
        $region26: #{tpu_custom_call.1} parent=23 // pred_check_branch
          %133 = sbr.rel (%p131) target = $region28
        $region27: #{tpu_custom_call.1} parent=23 // pred_region
          %p134 = scmp.lt.s32.totalorder %s12, 1
          %s135 = scalar_select %p134, %s12, 1
          %s136 = smul.addr %s135, 32
          %s137 = smul.addr %s136, 4
          %s138 = scalar_lea.vmem %s0, %s137
        $region28: #{tpu_custom_call.1} parent=23 // pred_fallthru
          _
      $region24: #{tpu_custom_call.1} parent=5 // pred_fallthru
        _
      %p139 = scmp.le.s32.totalorder 1, %s12
      %p140 = scmp.lt.s32.totalorder %s12, 3
      %p141 = pnand %p139, %p140
      %p142 = pneg %p141
      // Predicated region
      $region29: #{tpu_custom_call.1} parent=5 // pred_check
        _
      $region30: #{tpu_custom_call.1} parent=5 // pred_check_branch
        %144 = sbr.rel (%p141) target = $region32
      $region31: #{tpu_custom_call.1} parent=5 // pred_region
        %s145 = ssub.s32 %s12, 1
        %p146 = scmp.lt.s32.totalorder %s17, 1
        %s147 = scalar_select %p146, %s17, 1
        %s148 = smul.addr %s147, 32
        %s149 = smul.addr %s148, 4
        %s150 = scalar_lea.vmem %s0, %s149
        %p151 = pneg %p38
        %p152 = pneg %p35
        %p153 = pneg %p59
        %p154 = pneg %p56
        %p155 = pneg %p80
        %p156 = pneg %p77
        %p157 = pneg %p106
        %p158 = pneg %p103
        %s159 = sand.u32 %s93, 1
        %s160 = scalar_lea.sflag [#allocation3], %s159
        %s161 = sand.u32 %s93, 1
        %s162 = smul.addr %s161, 128
        %s163 = scalar_lea.vmem [#allocation2], %s162
        %p164 = scmp.lt.s32.totalorder %s17, 1
        %s165 = scalar_select %p164, %s17, 1
        %s166 = smul.addr %s165, 32
        %s167 = smul.addr %s166, 4
        %s168 = scalar_lea.vmem %s0, %s167
        %v170 = vld [vmem:[%s168] sm:$0xf]
        %v171 = vld [vmem:[%s168 + $0x4] sm:$0xf]
        %v172 = vld [vmem:[%s168 + $0x8] sm:$0xf]
        %v173 = vld [vmem:[%s168 + $0xc] sm:$0xf]
        %v174 = vld [vmem:[%s168 + $0x10] sm:$0xf]
        %v175 = vld [vmem:[%s168 + $0x14] sm:$0xf]
        %v176 = vld [vmem:[%s168 + $0x18] sm:$0xf]
        %v177 = vld [vmem:[%s168 + $0x1c] sm:$0xf]
        %v178 = vld [vmem:[%s168 + $0x20] sm:$0xf]
        %v179 = vld [vmem:[%s168 + $0x24] sm:$0xf]
        %v180 = vld [vmem:[%s168 + $0x28] sm:$0xf]
        %v181 = vld [vmem:[%s168 + $0x2c] sm:$0xf]
        %v182 = vld [vmem:[%s168 + $0x30] sm:$0xf]
        %v183 = vld [vmem:[%s168 + $0x34] sm:$0xf]
        %v184 = vld [vmem:[%s168 + $0x38] sm:$0xf]
        %v185 = vld [vmem:[%s168 + $0x3c] sm:$0xf]
        %v186 = vld [vmem:[%s168 + $0x40] sm:$0xf]
        %v187 = vld [vmem:[%s168 + $0x44] sm:$0xf]
        %v188 = vld [vmem:[%s168 + $0x48] sm:$0xf]
        %v189 = vld [vmem:[%s168 + $0x4c] sm:$0xf]
        %v190 = vld [vmem:[%s168 + $0x50] sm:$0xf]
        %v191 = vld [vmem:[%s168 + $0x54] sm:$0xf]
        %v192 = vld [vmem:[%s168 + $0x58] sm:$0xf]
        %v193 = vld [vmem:[%s168 + $0x5c] sm:$0xf]
        %v194 = vld [vmem:[%s168 + $0x60] sm:$0xf]
        %v195 = vld [vmem:[%s168 + $0x64] sm:$0xf]
        %v196 = vld [vmem:[%s168 + $0x68] sm:$0xf]
        %v197 = vld [vmem:[%s168 + $0x6c] sm:$0xf]
        %v198 = vld [vmem:[%s168 + $0x70] sm:$0xf]
        %v199 = vld [vmem:[%s168 + $0x74] sm:$0xf]
        %v200 = vld [vmem:[%s168 + $0x78] sm:$0xf]
        %v201 = vld [vmem:[%s168 + $0x7c] sm:$0xf]
        %v202 = vld [vmem:[%s1] sm:$0xf]
        %v203 = vld [vmem:[%s2] sm:$0x1]
        %v205 = vperm.slane %v203, 0
        %v239 = vunpack.c.l.b16 %v170
        %v240 = vunpack.c.l.b16 %v171
        %v241 = vunpack.c.l.b16 %v172
        %v242 = vunpack.c.l.b16 %v173
        %v243 = vunpack.c.l.b16 %v174
        %v244 = vunpack.c.l.b16 %v175
        %v245 = vunpack.c.l.b16 %v176
        %v246 = vunpack.c.l.b16 %v177
        %v247 = vunpack.c.l.b16 %v178
        %v248 = vunpack.c.l.b16 %v179
        %v249 = vunpack.c.l.b16 %v180
        %v250 = vunpack.c.l.b16 %v181
        %v251 = vunpack.c.l.b16 %v182
        %v252 = vunpack.c.l.b16 %v183
        %v253 = vunpack.c.l.b16 %v184
        %v254 = vunpack.c.l.b16 %v185
        %v255 = vunpack.c.l.b16 %v186
        %v256 = vunpack.c.l.b16 %v187
        %v257 = vunpack.c.l.b16 %v188
        %v258 = vunpack.c.l.b16 %v189
        %v259 = vunpack.c.l.b16 %v190
        %v260 = vunpack.c.l.b16 %v191
        %v261 = vunpack.c.l.b16 %v192
        %v262 = vunpack.c.l.b16 %v193
        %v263 = vunpack.c.l.b16 %v194
        %v264 = vunpack.c.l.b16 %v195
        %v265 = vunpack.c.l.b16 %v196
        %v266 = vunpack.c.l.b16 %v197
        %v267 = vunpack.c.l.b16 %v198
        %v268 = vunpack.c.l.b16 %v199
        %v269 = vunpack.c.l.b16 %v200
        %v270 = vunpack.c.l.b16 %v201
        %v271 = vpack.c.b16 %v240, %v239
        %v272 = vpack.c.b16 %v242, %v241
        %v273 = vpack.c.b16 %v244, %v243
        %v274 = vpack.c.b16 %v246, %v245
        %v275 = vpack.c.b16 %v248, %v247
        %v276 = vpack.c.b16 %v250, %v249
        %v277 = vpack.c.b16 %v252, %v251
        %v278 = vpack.c.b16 %v254, %v253
        %v279 = vpack.c.b16 %v256, %v255
        %v280 = vpack.c.b16 %v258, %v257
        %v281 = vpack.c.b16 %v260, %v259
        %v282 = vpack.c.b16 %v262, %v261
        %v283 = vpack.c.b16 %v264, %v263
        %v284 = vpack.c.b16 %v266, %v265
        %v285 = vpack.c.b16 %v268, %v267
        %v286 = vpack.c.b16 %v270, %v269
        %vm287 = vcmask 64512
        %v289 = vsel %vm287, %v271, 0
        %v292 = vsel %vm287, %v272, 0
        %v295 = vsel %vm287, %v273, 0
        %v298 = vsel %vm287, %v274, 0
        %v301 = vsel %vm287, %v275, 0
        %v304 = vsel %vm287, %v276, 0
        %v307 = vsel %vm287, %v277, 0
        %v310 = vsel %vm287, %v278, 0
        %v313 = vsel %vm287, %v279, 0
        %v316 = vsel %vm287, %v280, 0
        %v319 = vsel %vm287, %v281, 0
        %v322 = vsel %vm287, %v282, 0
        %v325 = vsel %vm287, %v283, 0
        %v328 = vsel %vm287, %v284, 0
        %v331 = vsel %vm287, %v285, 0
        %v334 = vsel %vm287, %v286, 0
        %vm336 = vcmask 1043456
        %v338 = vsel %vm336, %v202, 0
        %340 = vmatpush.bf16.msra.mxu0 0
        %341 = vmatpush.bf16.msra.mxu0 0
        %342 = vmatpush.bf16.msra.mxu0 0
        %343 = vmatpush.bf16.msra.mxu0 0
        %344 = vmatpush.bf16.msra.mxu0 0
        %345 = vmatpush.bf16.msra.mxu0 0
        %346 = vmatpush.bf16.msra.mxu0 0
        %347 = vmatpush.bf16.msra.mxu0 %v338
        %348 = vmatmul.bf16.gmra.mxu0 %v289
        %v349 = vpop.f32.mrf.mxu0
        %v350 = vadd.f32 %v205, %v349
        %v351 = vpop.f32.mrf.mxu0
        %v352 = vadd.f32 %v205, %v351
        %353 = vmatmul.bf16.gmra.mxu0 %v292
        %v354 = vpop.f32.mrf.mxu0
        %v355 = vadd.f32 %v205, %v354
        %v356 = vpop.f32.mrf.mxu0
        %v357 = vadd.f32 %v205, %v356
        %358 = vmatmul.bf16.gmra.mxu0 %v295
        %v359 = vpop.f32.mrf.mxu0
        %v360 = vadd.f32 %v205, %v359
        %v361 = vpop.f32.mrf.mxu0
        %v362 = vadd.f32 %v205, %v361
        %363 = vmatmul.bf16.gmra.mxu0 %v298
        %v364 = vpop.f32.mrf.mxu0
        %v365 = vadd.f32 %v205, %v364
        %v366 = vpop.f32.mrf.mxu0
        %v367 = vadd.f32 %v205, %v366
        %368 = vmatmul.bf16.gmra.mxu0 %v301
        %v369 = vpop.f32.mrf.mxu0
        %v370 = vadd.f32 %v205, %v369
        %v371 = vpop.f32.mrf.mxu0
        %v372 = vadd.f32 %v205, %v371
        %373 = vmatmul.bf16.gmra.mxu0 %v304
        %v374 = vpop.f32.mrf.mxu0
        %v375 = vadd.f32 %v205, %v374
        %v376 = vpop.f32.mrf.mxu0
        %v377 = vadd.f32 %v205, %v376
        %378 = vmatmul.bf16.gmra.mxu0 %v307
        %v379 = vpop.f32.mrf.mxu0
        %v380 = vadd.f32 %v205, %v379
        %v381 = vpop.f32.mrf.mxu0
        %v382 = vadd.f32 %v205, %v381
        %383 = vmatmul.bf16.gmra.mxu0 %v310
        %v384 = vpop.f32.mrf.mxu0
        %v385 = vadd.f32 %v205, %v384
        %v386 = vpop.f32.mrf.mxu0
        %v387 = vadd.f32 %v205, %v386
        %388 = vmatmul.bf16.gmra.mxu0 %v313
        %v389 = vpop.f32.mrf.mxu0
        %v390 = vadd.f32 %v205, %v389
        %v391 = vpop.f32.mrf.mxu0
        %v392 = vadd.f32 %v205, %v391
        %393 = vmatmul.bf16.gmra.mxu0 %v316
        %v394 = vpop.f32.mrf.mxu0
        %v395 = vadd.f32 %v205, %v394
        %v396 = vpop.f32.mrf.mxu0
        %v397 = vadd.f32 %v205, %v396
        %398 = vmatmul.bf16.gmra.mxu0 %v319
        %v399 = vpop.f32.mrf.mxu0
        %v400 = vadd.f32 %v205, %v399
        %v401 = vpop.f32.mrf.mxu0
        %v402 = vadd.f32 %v205, %v401
        %403 = vmatmul.bf16.gmra.mxu0 %v322
        %v404 = vpop.f32.mrf.mxu0
        %v405 = vadd.f32 %v205, %v404
        %v406 = vpop.f32.mrf.mxu0
        %v407 = vadd.f32 %v205, %v406
        %408 = vmatmul.bf16.gmra.mxu0 %v325
        %v409 = vpop.f32.mrf.mxu0
        %v410 = vadd.f32 %v205, %v409
        %v411 = vpop.f32.mrf.mxu0
        %v412 = vadd.f32 %v205, %v411
        %413 = vmatmul.bf16.gmra.mxu0 %v328
        %v414 = vpop.f32.mrf.mxu0
        %v415 = vadd.f32 %v205, %v414
        %v416 = vpop.f32.mrf.mxu0
        %v417 = vadd.f32 %v205, %v416
        %418 = vmatmul.bf16.gmra.mxu0 %v331
        %v419 = vpop.f32.mrf.mxu0
        %v420 = vadd.f32 %v205, %v419
        %v421 = vpop.f32.mrf.mxu0
        %v422 = vadd.f32 %v205, %v421
        %423 = vmatmul.bf16.gmra.mxu0 %v334
        %v424 = vpop.f32.mrf.mxu0
        %v425 = vadd.f32 %v205, %v424
        %v426 = vpop.f32.mrf.mxu0
        %v427 = vadd.f32 %v205, %v426
        %428 = vdwg.mxu0
        %v429 = vpack.c.bf16 %v350, %v350
        %v430 = vpack.c.bf16 %v352, %v352
        %v431 = vpack.c.bf16 %v355, %v355
        %v432 = vpack.c.bf16 %v357, %v357
        %v433 = vpack.c.bf16 %v360, %v360
        %v434 = vpack.c.bf16 %v362, %v362
        %v435 = vpack.c.bf16 %v365, %v365
        %v436 = vpack.c.bf16 %v367, %v367
        %v437 = vpack.c.bf16 %v370, %v370
        %v438 = vpack.c.bf16 %v372, %v372
        %v439 = vpack.c.bf16 %v375, %v375
        %v440 = vpack.c.bf16 %v377, %v377
        %v441 = vpack.c.bf16 %v380, %v380
        %v442 = vpack.c.bf16 %v382, %v382
        %v443 = vpack.c.bf16 %v385, %v385
        %v444 = vpack.c.bf16 %v387, %v387
        %v445 = vpack.c.bf16 %v390, %v390
        %v446 = vpack.c.bf16 %v392, %v392
        %v447 = vpack.c.bf16 %v395, %v395
        %v448 = vpack.c.bf16 %v397, %v397
        %v449 = vpack.c.bf16 %v400, %v400
        %v450 = vpack.c.bf16 %v402, %v402
        %v451 = vpack.c.bf16 %v405, %v405
        %v452 = vpack.c.bf16 %v407, %v407
        %v453 = vpack.c.bf16 %v410, %v410
        %v454 = vpack.c.bf16 %v412, %v412
        %v455 = vpack.c.bf16 %v415, %v415
        %v456 = vpack.c.bf16 %v417, %v417
        %v457 = vpack.c.bf16 %v420, %v420
        %v458 = vpack.c.bf16 %v422, %v422
        %v459 = vpack.c.bf16 %v425, %v425
        %v460 = vpack.c.bf16 %v427, %v427
        %vm461 = vcmask 257024
        %462 = vst.msk [vmem:[%s163] sm:$0xf] %vm461, %v429
        %463 = vst.msk [vmem:[%s163 + $0x4] sm:$0xf] %vm461, %v430
        %464 = vst.msk [vmem:[%s163 + $0x8] sm:$0xf] %vm461, %v431
        %465 = vst.msk [vmem:[%s163 + $0xc] sm:$0xf] %vm461, %v432
        %466 = vst.msk [vmem:[%s163 + $0x10] sm:$0xf] %vm461, %v433
        %467 = vst.msk [vmem:[%s163 + $0x14] sm:$0xf] %vm461, %v434
        %468 = vst.msk [vmem:[%s163 + $0x18] sm:$0xf] %vm461, %v435
        %469 = vst.msk [vmem:[%s163 + $0x1c] sm:$0xf] %vm461, %v436
        %470 = vst.msk [vmem:[%s163 + $0x20] sm:$0xf] %vm461, %v437
        %471 = vst.msk [vmem:[%s163 + $0x24] sm:$0xf] %vm461, %v438
        %472 = vst.msk [vmem:[%s163 + $0x28] sm:$0xf] %vm461, %v439
        %473 = vst.msk [vmem:[%s163 + $0x2c] sm:$0xf] %vm461, %v440
        %474 = vst.msk [vmem:[%s163 + $0x30] sm:$0xf] %vm461, %v441
        %475 = vst.msk [vmem:[%s163 + $0x34] sm:$0xf] %vm461, %v442
        %476 = vst.msk [vmem:[%s163 + $0x38] sm:$0xf] %vm461, %v443
        %477 = vst.msk [vmem:[%s163 + $0x3c] sm:$0xf] %vm461, %v444
        %478 = vst.msk [vmem:[%s163 + $0x40] sm:$0xf] %vm461, %v445
        %479 = vst.msk [vmem:[%s163 + $0x44] sm:$0xf] %vm461, %v446
        %480 = vst.msk [vmem:[%s163 + $0x48] sm:$0xf] %vm461, %v447
        %481 = vst.msk [vmem:[%s163 + $0x4c] sm:$0xf] %vm461, %v448
        %482 = vst.msk [vmem:[%s163 + $0x50] sm:$0xf] %vm461, %v449
        %483 = vst.msk [vmem:[%s163 + $0x54] sm:$0xf] %vm461, %v450
        %484 = vst.msk [vmem:[%s163 + $0x58] sm:$0xf] %vm461, %v451
        %485 = vst.msk [vmem:[%s163 + $0x5c] sm:$0xf] %vm461, %v452
        %486 = vst.msk [vmem:[%s163 + $0x60] sm:$0xf] %vm461, %v453
        %487 = vst.msk [vmem:[%s163 + $0x64] sm:$0xf] %vm461, %v454
        %488 = vst.msk [vmem:[%s163 + $0x68] sm:$0xf] %vm461, %v455
        %489 = vst.msk [vmem:[%s163 + $0x6c] sm:$0xf] %vm461, %v456
        %490 = vst.msk [vmem:[%s163 + $0x70] sm:$0xf] %vm461, %v457
        %491 = vst.msk [vmem:[%s163 + $0x74] sm:$0xf] %vm461, %v458
        %492 = vst.msk [vmem:[%s163 + $0x78] sm:$0xf] %vm461, %v459
        %493 = vst.msk [vmem:[%s163 + $0x7c] sm:$0xf] %vm461, %v460
        %s494 = sand.u32 %s93, 1
        %s495 = scalar_lea.sflag [#allocation3], %s494
        %s496 = sand.u32 %s93, 1
        %s497 = smul.addr %s496, 128
        %s498 = scalar_lea.vmem [#allocation2], %s497
        // Predicated region
        $region33: #{tpu_custom_call.1} parent=31 // pred_check
          %p499 = pneg %p103
        $region34: #{tpu_custom_call.1} parent=31 // pred_check_branch
          %501 = sbr.rel (%p499) target = $region36
        $region35: #{tpu_custom_call.1} parent=31 // pred_region
          %503 = vsyncadd %s495, 0
          %s504 = smul.addr %s17, 32
          %s505 = smul.addr %s504, 4
          %s506 = scalar_lea.hbm %s3, %s505
          %s507 = sshll.u32 %s498, 4
          %s508 = int_to_ptr.vmem [resolvable:$true] %s507
          %s509 = sshll.u32 %s506, 4
          %s510 = int_to_ptr.hbm [resolvable:$true] %s509
          %515 = dma.vmem_to_hbm [thread:$0]  %s508, 2048, %s510, %s495, 64, 64, 4
        $region36: #{tpu_custom_call.1} parent=31 // pred_fallthru
          _
      $region32: #{tpu_custom_call.1} parent=5 // pred_fallthru
        _
      %p516 = scmp.le.s32.totalorder 2, %s12
      // Predicated region
      $region37: #{tpu_custom_call.1} parent=5 // pred_check
        %p517 = pneg %p516
      $region38: #{tpu_custom_call.1} parent=5 // pred_check_branch
        %519 = sbr.rel (%p517) target = $region40
      $region39: #{tpu_custom_call.1} parent=5 // pred_region
        %s520 = ssub.s32 %s12, 2
        // Predicated region
        $region41: #{tpu_custom_call.1} parent=39 // pred_check
          %p521 = pneg %p109
        $region42: #{tpu_custom_call.1} parent=39 // pred_check_branch
          %523 = sbr.rel (%p521) target = $region44
        $region43: #{tpu_custom_call.1} parent=39 // pred_region
          %s524 = sand.u32 %s94, 1
          %s525 = scalar_lea.sflag [#allocation3], %s524
          %s526 = sand.u32 %s94, 1
          %s527 = smul.addr %s526, 128
          %s528 = scalar_lea.vmem [#allocation2], %s527
          %530 = dma.done %s525, 2048
        $region44: #{tpu_custom_call.1} parent=39 // pred_fallthru
          _
      $region40: #{tpu_custom_call.1} parent=5 // pred_fallthru
        _
    $region6: #{tpu_custom_call.1} parent=1 // loop_footer
      %s16 = sadd.s32 1, %s12
    $region7: #{tpu_custom_call.1} parent=1 // loop_footer_branch
      %11 = sbr.rel target = $region3
    $region8: #{tpu_custom_call.1} parent=1 // loop_exit
      _
    %531 = vsyncpa [#allocation3], 1
    %s532 = scalar_lea.sflag [#allocation3], 1
    %533 = vsyncpa %s532, 1

</llo_original>
